<compile_context>
chip_gen: v5e
topology: v5e:2x2
jax: 0.10.0
libtpu: 0.0.40
codegen_flags: <defaults>
</compile_context>

<pallas_src>
import jax
import jax.numpy as jnp
from jax.experimental import pallas as pl
from jax.experimental.pallas import tpu as pltpu


def _round_up(n, m):
    return ((n + m - 1) // m) * m


def _masked_linear_kernel(x_ref, w_ref, b_ref, m_ref, o_ref):
    # x_ref: (TN, D_in) bf16   w_ref: (D_in, TD) bf16   b_ref: (1, TD) f32
    # m_ref: (TN, 1) f32 combined mask                  o_ref: (TN, TD)
    y = jnp.dot(x_ref[...], w_ref[...], preferred_element_type=jnp.float32)
    y = (y + b_ref[...]) * m_ref[...]          # bias + fused mask multiply
    o_ref[...] = y.astype(o_ref.dtype)


def _linear_kernel(x_ref, w_ref, b_ref, o_ref):
    # Specialization used when neither mask flag is set (no multiply-by-ones).
    y = jnp.dot(x_ref[...], w_ref[...], preferred_element_type=jnp.float32)
    y = y + b_ref[...]
    o_ref[...] = y.astype(o_ref.dtype)


def masked_model_forward(x, w, b, mask=None, mask_bulk=None, *,
                         apply_mask=True, apply_mask_bulk=False,
                         tile_n=256, tile_dout=512,
                         matmul_dtype=jnp.bfloat16):
    """Pallas equivalent of MaskedModel.forward with a linear inner model.

    x:         [N, D_in] node features
    w:         [D_in, D_out]
    b:         [D_out]
    mask:      [N] (reshapable to N,)  -- graph.mask       (used iff apply_mask)
    mask_bulk: [N]                      -- graph.mask_bulk  (used iff apply_mask_bulk)
    Set matmul_dtype=jnp.float32 if full f32 matmul precision is required.
    """
    N, d_in = x.shape
    d_out = w.shape[1]
    out_dtype = x.dtype

    # ---- combine the masks into a single [N, 1] operand (or none at all) ----
    m = None
    if apply_mask:
        if mask is None:
            raise ValueError("apply_mask=True but mask is None")
        m = mask.reshape(-1).astype(jnp.float32)
    if apply_mask_bulk:
        if mask_bulk is None:
            raise ValueError("apply_mask_bulk=True but mask_bulk is None")
        mb = mask_bulk.reshape(-1).astype(jnp.float32)
        m = mb if m is None else m * mb

    # ---- TPU-friendly padding / tiling ----
    tile_n = _round_up(max(8, min(tile_n, _round_up(N, 8))), 8)
    n_pad = _round_up(N, tile_n)
    tile_dout = min(max(128, _round_up(tile_dout, 128)), _round_up(d_out, 128))
    d_out_p = _round_up(d_out, tile_dout)          # lane-dense output stores

    x_p = jnp.pad(x, ((0, n_pad - N), (0, 0))) if n_pad != N else x
    if d_out_p != d_out:
        w_p = jnp.pad(w, ((0, 0), (0, d_out_p - d_out)))
        b_p = jnp.pad(b, (0, d_out_p - d_out))
    else:
        w_p, b_p = w, b

    x_p = x_p.astype(matmul_dtype)
    w_p = w_p.astype(matmul_dtype)
    b2 = b_p.reshape(1, d_out_p).astype(jnp.float32)

    grid = (n_pad // tile_n, d_out_p // tile_dout)

    x_spec = pl.BlockSpec((tile_n, d_in), lambda i, j: (i, 0))
    w_spec = pl.BlockSpec((d_in, tile_dout), lambda i, j: (0, j))
    b_spec = pl.BlockSpec((1, tile_dout), lambda i, j: (0, j))
    o_spec = pl.BlockSpec((tile_n, tile_dout), lambda i, j: (i, j))

    in_itemsize = jnp.dtype(matmul_dtype).itemsize
    bytes_accessed = (n_pad * d_in * in_itemsize
                      + d_in * d_out_p * in_itemsize
                      + d_out_p * 4
                      + n_pad * d_out_p * jnp.dtype(out_dtype).itemsize)

    in_specs = [x_spec, w_spec, b_spec]
    inputs = [x_p, w_p, b2]
    kernel = _linear_kernel
    if m is not None:
        m_p = jnp.pad(m, (0, n_pad - N)) if n_pad != N else m
        m_p = m_p.reshape(n_pad, 1)
        in_specs.append(pl.BlockSpec((tile_n, 1), lambda i, j: (i, 0)))
        inputs.append(m_p)
        kernel = _masked_linear_kernel
        bytes_accessed += n_pad * 4

    out = pl.pallas_call(
        kernel,
        out_shape=jax.ShapeDtypeStruct((n_pad, d_out_p), out_dtype),
        grid_spec=pltpu.PrefetchScalarGridSpec(
            num_scalar_prefetch=0,
            grid=grid,
            in_specs=in_specs,
            out_specs=o_spec,
        ),
        compiler_params=pltpu.CompilerParams(
            dimension_semantics=("parallel", "parallel"),
            vmem_limit_bytes=32 * 1024 * 1024,
        ),
        cost_estimate=pl.CostEstimate(
            flops=2 * n_pad * d_in * d_out_p,
            transcendentals=0,
            bytes_accessed=int(bytes_accessed),
        ),
    )(*inputs)

    return out[:N, :d_out]


if __name__ == "__main__":
    key = jax.random.PRNGKey(0)
    k_x, k_w, k_b, k_m, k_mb = jax.random.split(key, 5)

    # Small "graph": 520 nodes, 64 input feats, 96 output feats.
    # (Non-multiples deliberately exercise the padding paths:
    #  N -> 768 rows / 3 grid steps, d_out -> 128 lanes.)
    N, D_IN, D_OUT = 520, 64, 96
    x = jax.random.normal(k_x, (N, D_IN), dtype=jnp.float32)
    w = jax.random.normal(k_w, (D_IN, D_OUT), dtype=jnp.float32) * 0.1
    b = jax.random.normal(k_b, (D_OUT,), dtype=jnp.float32) * 0.1
    # graph.mask: mask out the "final step" nodes (here: last 40 nodes).
    mask = (jnp.arange(N) < N - 40).astype(jnp.float32)
    mask_bulk = (jax.random.uniform(k_mb, (N,)) > 0.3).astype(jnp.float32)

    # mask + mask_bulk path
    out = masked_model_forward(x, w, b, mask, mask_bulk,
                               apply_mask=True, apply_mask_bulk=True)
    out = jax.block_until_ready(out)
    assert out.shape == (N, D_OUT)

    comb = mask * mask_bulk
    ref = (x @ w + b[None, :]) * comb[:, None]
    # Kernel feeds the MXU bf16 inputs with f32 accumulation -> bf16 tolerance.
    assert jnp.allclose(out, ref, atol=5e-2, rtol=5e-2), "mismatch vs reference"
    # Masked rows must be exactly zero (mask applied after accumulation).
    assert bool(jnp.all(jnp.where((comb == 0.0)[:, None], out == 0.0, True)))

    # mask-only path
    out_m = jax.block_until_ready(
        masked_model_forward(x, w, b, mask, apply_mask=True, apply_mask_bulk=False))
    ref_m = (x @ w + b[None, :]) * mask[:, None]
    assert jnp.allclose(out_m, ref_m, atol=5e-2, rtol=5e-2), "mask-only mismatch"

    # no-mask specialization
    out_nm = jax.block_until_ready(
        masked_model_forward(x, w, b, apply_mask=False, apply_mask_bulk=False))
    ref_nm = x @ w + b[None, :]
    assert jnp.allclose(out_nm, ref_nm, atol=5e-2, rtol=5e-2), "no-mask mismatch"

    print("KERNEL_OK")
</pallas_src>

<mosaic_0001>
module attributes {stable_mosaic.version = 11 : i64} {
  func.func @_masked_linear_kernel(%arg0: i32, %arg1: i32, %arg2: memref<256x64xbf16, #tpu.memory_space<vmem>>, %arg3: memref<64x128xbf16, #tpu.memory_space<vmem>>, %arg4: memref<1x128xf32, #tpu.memory_space<vmem>>, %arg5: memref<256x1xf32, #tpu.memory_space<vmem>>, %arg6: memref<256x128xf32, #tpu.memory_space<vmem>>) attributes {dimension_semantics = [#tpu.dimension_semantics<parallel>, #tpu.dimension_semantics<parallel>], iteration_bounds = array<i64: 3, 1>, scalar_prefetch = 0 : i64, scratch_operands = 0 : i64, tpu.core_type = #tpu.core_type<tc>, window_params = [{transform_indices = @transform_0, window_bounds = array<i64: 256, 64>}, {transform_indices = @transform_1, window_bounds = array<i64: 64, 128>}, {transform_indices = @transform_2, window_bounds = array<i64: 1, 128>}, {transform_indices = @transform_3, window_bounds = array<i64: 256, 1>}, {transform_indices = @transform_4, window_bounds = array<i64: 256, 128>}]} {
    %c0 = arith.constant 0 : index
    %c0_0 = arith.constant 0 : index
    %0 = vector.load %arg2[%c0, %c0_0] : memref<256x64xbf16, #tpu.memory_space<vmem>>, vector<256x64xbf16>
    %c0_1 = arith.constant 0 : index
    %c0_2 = arith.constant 0 : index
    %1 = vector.load %arg3[%c0_1, %c0_2] : memref<64x128xbf16, #tpu.memory_space<vmem>>, vector<64x128xbf16>
    %cst = arith.constant dense<0.000000e+00> : vector<256x128xf32>
    %2 = tpu.matmul %0, %1, %cst {dimension_numbers = #tpu.dot_dimension_numbers<[1], [0], [0], [1], [0, 0, 1, 1], [], []>} : vector<256x64xbf16>, vector<64x128xbf16>, vector<256x128xf32> -> vector<256x128xf32>
    %c0_3 = arith.constant 0 : index
    %c0_4 = arith.constant 0 : index
    %3 = vector.load %arg4[%c0_3, %c0_4] : memref<1x128xf32, #tpu.memory_space<vmem>>, vector<1x128xf32>
    %4 = vector.broadcast %3 : vector<1x128xf32> to vector<256x128xf32>
    %5 = arith.addf %2, %4 : vector<256x128xf32>
    %c0_5 = arith.constant 0 : index
    %c0_6 = arith.constant 0 : index
    %6 = vector.load %arg5[%c0_5, %c0_6] : memref<256x1xf32, #tpu.memory_space<vmem>>, vector<256x1xf32>
    %7 = vector.broadcast %6 : vector<256x1xf32> to vector<256x128xf32>
    %8 = arith.mulf %5, %7 : vector<256x128xf32>
    %c0_7 = arith.constant 0 : index
    %c0_8 = arith.constant 0 : index
    %9 = vector.load %arg6[%c0_7, %c0_8] : memref<256x128xf32, #tpu.memory_space<vmem>>, vector<256x128xf32>
    tpu.vector_store %arg6[%c0_7, %c0_8], %8 {strides = array<i32>} : memref<256x128xf32, #tpu.memory_space<vmem>>, vector<256x128xf32>,
    return
  }
  func.func @transform_0(%arg0: i32, %arg1: i32) -> (i32, i32) {
    %c0_i32 = arith.constant 0 : i32
    %c0_i32_0 = arith.constant 0 : i32
    return %arg0, %c0_i32 : i32, i32
  }
  func.func @transform_1(%arg0: i32, %arg1: i32) -> (i32, i32) {
    %c0_i32 = arith.constant 0 : i32
    %c0_i32_0 = arith.constant 0 : i32
    return %c0_i32, %arg1 : i32, i32
  }
  func.func @transform_2(%arg0: i32, %arg1: i32) -> (i32, i32) {
    %c0_i32 = arith.constant 0 : i32
    %c0_i32_0 = arith.constant 0 : i32
    return %c0_i32, %arg1 : i32, i32
  }
  func.func @transform_3(%arg0: i32, %arg1: i32) -> (i32, i32) {
    %c0_i32 = arith.constant 0 : i32
    %c0_i32_0 = arith.constant 0 : i32
    return %arg0, %c0_i32 : i32, i32
  }
  func.func @transform_4(%arg0: i32, %arg1: i32) -> (i32, i32) {
    %c0_i32 = arith.constant 0 : i32
    return %arg0, %arg1 : i32, i32
  }
}

</mosaic_0001>

<llo_original>
// kernel: tpu_custom_call.1
$region0: #{tpu_custom_call.1}
  #allocation0 [shape = 'u32[]', space=smem, size = 0x4, offset = 0x4, fixed_abs, tag = 'smem constant byte address 0x4 - core index']
  #allocation1 [shape = 'u32[72,128]{1,0:T(1,128)}', space=vmem, size = 0x9000, scoped, tag = 'internal scratch']
  %s0 = inlined_call_operand.vmem [shape: bf16[768,64], index: 0, kind: input, shape index: {}]
  %s1 = inlined_call_operand.vmem [shape: bf16[64,128], index: 1, kind: input, shape index: {}]
  %s2 = inlined_call_operand.vmem [shape: f32[1,128], index: 2, kind: input, shape index: {}]
  %s3 = inlined_call_operand.vmem [shape: f32[768,1], index: 3, kind: input, shape index: {}]
  %s4 = inlined_call_operand.hbm [shape: f32[768,128], index: 4, kind: output, shape index: {}]
  %s5 = sld [smem:[#allocation0]]
  $region49: #{tpu_custom_call.1} parent=0
    _
  %s7 = ssub.s32 1, %s5
  %s8 = scalar_select 0, %s7, %s5
  $region1: #{tpu_custom_call.1} parent=0
    #allocation2 [shape = 'u8[262144]{0}', space=vmem, size = 0x40000, scoped, tag = 'output window, operand 0']
    #allocation3 [shape = 's32[2]{0}', space=sflag, size = 0x8, scoped, tag = 'scoped memory for tpu_custom_call.1']
    %9 = vsyncpa [#allocation3], 0
    %s10 = scalar_lea.sflag [#allocation3], 1
    %11 = vsyncpa %s10, 0
    loop: start=0, step=1, limit=5
    $region2: #{tpu_custom_call.1} parent=1 // loop_pre_header
      _
    $region3: #{tpu_custom_call.1} parent=1 // loop_header
      %s13 = sphi 0, %s17
      %p14 = scmp.ge.s32.totalorder %s13, 5
      %s20 = sphi 0, %s32
      %s21 = sphi 0, %s28
      %s22 = sphi 0, %s20
      %s23 = sphi 0, %s21
      %s24 = sphi 0, %s22
      %s25 = sphi 0, %s23
      %s35 = sphi 0, %s37
      %s38 = sphi 0, %s35
      %s39 = sphi 0, %s38
      %s55 = sphi 0, %s39
      %s61 = sphi 0, %s63
      %s64 = sphi 0, %s61
      %s65 = sphi 0, %s64
      %s81 = sphi 0, %s65
      %s87 = sphi 0, %s89
      %s90 = sphi 0, %s87
      %s91 = sphi 0, %s90
      %s107 = sphi 0, %s91
      %s113 = sphi 0, %s115
      %s116 = sphi 0, %s113
      %s117 = sphi 0, %s116
      %s133 = sphi 0, %s117
      %s141 = sphi 0, %s143
      %s144 = sphi 0, %s141
      %s145 = sphi 0, %s144
      %s161 = sphi 0, %s145
    $region4: #{tpu_custom_call.1} parent=1 // loop_header_branch
      %16 = sbr.rel (%p14) target = $region8
    $region5: #{tpu_custom_call.1} parent=1 // loop_body
      %s18 = ssub.s32 %s13, 1
      %s19 = ssub.s32 %s13, 2
      %s26 = sadd.s32 1, %s21
      %p27 = scmp.ge.s32.totalorder %s26, 1
      %s28 = scalar_select %p27, 0, %s26
      %s29 = sadd.s32 1, %s20
      %s30 = scalar_select %p27, %s29, %s20
      %p31 = scmp.ge.s32.totalorder %s30, 3
      %s32 = scalar_select %p31, 0, %s30
      %s33 = ssub.s32 %s20, %s32
      %p34 = scmp.eq.s32.totalorder %s33, 0
      %s36 = sadd.s32 %s35, 1
      %s37 = scalar_select %p34, %s35, %s36
      %p40 = pneg %p34
      %p41 = scmp.eq.s32.totalorder %s13, 2
      %p42 = por %p40, %p41
      %p43 = scmp.ne.s32.totalorder %s35, %s38
      %p44 = scmp.eq.s32.totalorder %s13, 0
      %p45 = por %p43, %p44
      %p46 = scmp.ne.s32.totalorder %s35, %s38
      %p47 = scmp.eq.s32.totalorder %s18, 2
      %p48 = por %p46, %p47
      %p49 = scmp.ne.s32.totalorder %s38, %s39
      %p50 = scmp.eq.s32.totalorder %s18, 0
      %p51 = por %p49, %p50
      %p52 = scmp.ne.s32.totalorder %s38, %s39
      %p53 = scmp.eq.s32.totalorder %s19, 2
      %p54 = por %p52, %p53
      %p56 = scmp.ne.s32.totalorder %s39, %s55
      %p57 = scmp.eq.s32.totalorder %s19, 0
      %p58 = por %p56, %p57
      %s59 = ssub.s32 %s21, %s28
      %p60 = scmp.eq.s32.totalorder %s59, 0
      %s62 = sadd.s32 %s61, 1
      %s63 = scalar_select %p60, %s61, %s62
      %p66 = pneg %p60
      %p67 = scmp.eq.s32.totalorder %s13, 2
      %p68 = por %p66, %p67
      %p69 = scmp.ne.s32.totalorder %s61, %s64
      %p70 = scmp.eq.s32.totalorder %s13, 0
      %p71 = por %p69, %p70
      %p72 = scmp.ne.s32.totalorder %s61, %s64
      %p73 = scmp.eq.s32.totalorder %s18, 2
      %p74 = por %p72, %p73
      %p75 = scmp.ne.s32.totalorder %s64, %s65
      %p76 = scmp.eq.s32.totalorder %s18, 0
      %p77 = por %p75, %p76
      %p78 = scmp.ne.s32.totalorder %s64, %s65
      %p79 = scmp.eq.s32.totalorder %s19, 2
      %p80 = por %p78, %p79
      %p82 = scmp.ne.s32.totalorder %s65, %s81
      %p83 = scmp.eq.s32.totalorder %s19, 0
      %p84 = por %p82, %p83
      %s85 = ssub.s32 %s21, %s28
      %p86 = scmp.eq.s32.totalorder %s85, 0
      %s88 = sadd.s32 %s87, 1
      %s89 = scalar_select %p86, %s87, %s88
      %p92 = pneg %p86
      %p93 = scmp.eq.s32.totalorder %s13, 2
      %p94 = por %p92, %p93
      %p95 = scmp.ne.s32.totalorder %s87, %s90
      %p96 = scmp.eq.s32.totalorder %s13, 0
      %p97 = por %p95, %p96
      %p98 = scmp.ne.s32.totalorder %s87, %s90
      %p99 = scmp.eq.s32.totalorder %s18, 2
      %p100 = por %p98, %p99
      %p101 = scmp.ne.s32.totalorder %s90, %s91
      %p102 = scmp.eq.s32.totalorder %s18, 0
      %p103 = por %p101, %p102
      %p104 = scmp.ne.s32.totalorder %s90, %s91
      %p105 = scmp.eq.s32.totalorder %s19, 2
      %p106 = por %p104, %p105
      %p108 = scmp.ne.s32.totalorder %s91, %s107
      %p109 = scmp.eq.s32.totalorder %s19, 0
      %p110 = por %p108, %p109
      %s111 = ssub.s32 %s20, %s32
      %p112 = scmp.eq.s32.totalorder %s111, 0
      %s114 = sadd.s32 %s113, 1
      %s115 = scalar_select %p112, %s113, %s114
      %p118 = pneg %p112
      %p119 = scmp.eq.s32.totalorder %s13, 2
      %p120 = por %p118, %p119
      %p121 = scmp.ne.s32.totalorder %s113, %s116
      %p122 = scmp.eq.s32.totalorder %s13, 0
      %p123 = por %p121, %p122
      %p124 = scmp.ne.s32.totalorder %s113, %s116
      %p125 = scmp.eq.s32.totalorder %s18, 2
      %p126 = por %p124, %p125
      %p127 = scmp.ne.s32.totalorder %s116, %s117
      %p128 = scmp.eq.s32.totalorder %s18, 0
      %p129 = por %p127, %p128
      %p130 = scmp.ne.s32.totalorder %s116, %s117
      %p131 = scmp.eq.s32.totalorder %s19, 2
      %p132 = por %p130, %p131
      %p134 = scmp.ne.s32.totalorder %s117, %s133
      %p135 = scmp.eq.s32.totalorder %s19, 0
      %p136 = por %p134, %p135
      %s137 = ssub.s32 %s20, %s32
      %s138 = ssub.s32 %s21, %s28
      %s139 = sor.u32 %s137, %s138
      %p140 = scmp.eq.s32.totalorder %s139, 0
      %s142 = sadd.s32 %s141, 1
      %s143 = scalar_select %p140, %s141, %s142
      %p146 = pneg %p140
      %p147 = scmp.eq.s32.totalorder %s13, 2
      %p148 = por %p146, %p147
      %p149 = scmp.ne.s32.totalorder %s141, %s144
      %p150 = scmp.eq.s32.totalorder %s13, 0
      %p151 = por %p149, %p150
      %p152 = scmp.ne.s32.totalorder %s141, %s144
      %p153 = scmp.eq.s32.totalorder %s18, 2
      %p154 = por %p152, %p153
      %p155 = scmp.ne.s32.totalorder %s144, %s145
      %p156 = scmp.eq.s32.totalorder %s18, 0
      %p157 = por %p155, %p156
      %p158 = scmp.ne.s32.totalorder %s144, %s145
      %p159 = scmp.eq.s32.totalorder %s19, 2
      %p160 = por %p158, %p159
      %p162 = scmp.ne.s32.totalorder %s145, %s161
      %p163 = scmp.eq.s32.totalorder %s19, 0
      %p164 = por %p162, %p163
      %p165 = scmp.le.s32.totalorder 1, %s13
      %p166 = scmp.lt.s32.totalorder %s13, 4
      %p167 = pnand %p165, %p166
      %p168 = pneg %p167
      // Predicated region
      $region9: #{tpu_custom_call.1} parent=5 // pred_check
        _
      $region10: #{tpu_custom_call.1} parent=5 // pred_check_branch
        %170 = sbr.rel (%p167) target = $region12
      $region11: #{tpu_custom_call.1} parent=5 // pred_region
        %s171 = ssub.s32 %s13, 1
        // Predicated region
        $region13: #{tpu_custom_call.1} parent=11 // pred_check
          %p172 = pneg %p77
        $region14: #{tpu_custom_call.1} parent=11 // pred_check_branch
          %174 = sbr.rel (%p172) target = $region16
        $region15: #{tpu_custom_call.1} parent=11 // pred_region
          %p175 = scmp.lt.s32.totalorder %s23, 0
          %s176 = scalar_select %p175, %s23, 0
          %s177 = smul.addr %s176, 4
          %s178 = scalar_lea.vmem %s1, %s177
        $region16: #{tpu_custom_call.1} parent=11 // pred_fallthru
          _
        // Predicated region
        $region17: #{tpu_custom_call.1} parent=11 // pred_check
          %p179 = pneg %p103
        $region18: #{tpu_custom_call.1} parent=11 // pred_check_branch
          %181 = sbr.rel (%p179) target = $region20
        $region19: #{tpu_custom_call.1} parent=11 // pred_region
          %p182 = scmp.lt.s32.totalorder %s23, 0
          %s183 = scalar_select %p182, %s23, 0
          %s184 = scalar_lea.vmem %s2, %s183
        $region20: #{tpu_custom_call.1} parent=11 // pred_fallthru
          _
      $region12: #{tpu_custom_call.1} parent=5 // pred_fallthru
        _
      %p185 = scmp.lt.s32.totalorder %s13, 3
      // Predicated region
      $region21: #{tpu_custom_call.1} parent=5 // pred_check
        %p186 = pneg %p185
      $region22: #{tpu_custom_call.1} parent=5 // pred_check_branch
        %188 = sbr.rel (%p186) target = $region24
      $region23: #{tpu_custom_call.1} parent=5 // pred_region
        // Predicated region
        $region25: #{tpu_custom_call.1} parent=23 // pred_check
          %p189 = pneg %p45
        $region26: #{tpu_custom_call.1} parent=23 // pred_check_branch
          %191 = sbr.rel (%p189) target = $region28
        $region27: #{tpu_custom_call.1} parent=23 // pred_region
          %s192 = smul.u32 32, %s20
          %p193 = scmp.lt.s32.totalorder %s192, 95
          %s194 = scalar_select %p193, %s192, 95
          %s195 = smul.addr %s194, 4
          %s196 = scalar_lea.vmem %s0, %s195
          %s197 = smul.u32 32, %s20
        $region28: #{tpu_custom_call.1} parent=23 // pred_fallthru
          _
        // Predicated region
        $region29: #{tpu_custom_call.1} parent=23 // pred_check
          %p198 = pneg %p123
        $region30: #{tpu_custom_call.1} parent=23 // pred_check_branch
          %200 = sbr.rel (%p198) target = $region32
        $region31: #{tpu_custom_call.1} parent=23 // pred_region
          %s201 = smul.u32 32, %s20
          %p202 = scmp.lt.s32.totalorder %s201, 95
          %s203 = scalar_select %p202, %s201, 95
          %s204 = smul.addr %s203, 8
          %s205 = scalar_lea.vmem %s3, %s204
          %s206 = smul.u32 32, %s20
        $region32: #{tpu_custom_call.1} parent=23 // pred_fallthru
          _
      $region24: #{tpu_custom_call.1} parent=5 // pred_fallthru
        _
      %p207 = scmp.le.s32.totalorder 1, %s13
      %p208 = scmp.lt.s32.totalorder %s13, 4
      %p209 = pnand %p207, %p208
      %p210 = pneg %p209
      // Predicated region
      $region33: #{tpu_custom_call.1} parent=5 // pred_check
        _
      $region34: #{tpu_custom_call.1} parent=5 // pred_check_branch
        %212 = sbr.rel (%p209) target = $region36
      $region35: #{tpu_custom_call.1} parent=5 // pred_region
        %s213 = ssub.s32 %s13, 1
        %s214 = smul.u32 32, %s22
        %p215 = scmp.lt.s32.totalorder %s214, 95
        %s216 = scalar_select %p215, %s214, 95
        %s217 = smul.addr %s216, 4
        %s218 = scalar_lea.vmem %s0, %s217
        %p219 = pneg %p51
        %p220 = pneg %p48
        %p221 = scmp.lt.s32.totalorder %s23, 0
        %s222 = scalar_select %p221, %s23, 0
        %s223 = smul.addr %s222, 4
        %s224 = scalar_lea.vmem %s1, %s223
        %p225 = pneg %p77
        %p226 = pneg %p74
        %p227 = scmp.lt.s32.totalorder %s23, 0
        %s228 = scalar_select %p227, %s23, 0
        %s229 = scalar_lea.vmem %s2, %s228
        %p230 = pneg %p103
        %p231 = pneg %p100
        %s232 = smul.u32 32, %s22
        %p233 = scmp.lt.s32.totalorder %s232, 95
        %s234 = scalar_select %p233, %s232, 95
        %s235 = smul.addr %s234, 8
        %s236 = scalar_lea.vmem %s3, %s235
        %p237 = pneg %p129
        %p238 = pneg %p126
        %p239 = pneg %p157
        %p240 = pneg %p154
        %s241 = sand.u32 %s144, 1
        %s242 = scalar_lea.sflag [#allocation3], %s241
        %s243 = sand.u32 %s144, 1
        %s244 = smul.addr %s243, 256
        %s245 = scalar_lea.vmem [#allocation2], %s244
        %s246 = smul.u32 32, %s22
        %p247 = scmp.lt.s32.totalorder %s246, 95
        %s248 = scalar_select %p247, %s246, 95
        %s249 = smul.addr %s248, 4
        %s250 = scalar_lea.vmem %s0, %s249
        %s251 = smul.u32 32, %s22
        %p252 = scmp.lt.s32.totalorder %s23, 0
        %s253 = scalar_select %p252, %s23, 0
        %s254 = smul.addr %s253, 4
        %s255 = scalar_lea.vmem %s1, %s254
        %p256 = scmp.lt.s32.totalorder %s23, 0
        %s257 = scalar_select %p256, %s23, 0
        %s258 = scalar_lea.vmem %s2, %s257
        %s259 = smul.u32 32, %s22
        %p260 = scmp.lt.s32.totalorder %s259, 95
        %s261 = scalar_select %p260, %s259, 95
        %s262 = smul.addr %s261, 8
        %s263 = scalar_lea.vmem %s3, %s262
        %s264 = smul.u32 32, %s22
        %s265 = smul.u32 32, %s22
        %v267 = vld [vmem:[%s250] sm:$0xf]
        %v268 = vld [vmem:[%s250 + $0x4] sm:$0xf]
        %v269 = vld [vmem:[%s250 + $0x8] sm:$0xf]
        %v270 = vld [vmem:[%s250 + $0xc] sm:$0xf]
        %v271 = vld [vmem:[%s250 + $0x10] sm:$0xf]
        %v272 = vld [vmem:[%s250 + $0x14] sm:$0xf]
        %v273 = vld [vmem:[%s250 + $0x18] sm:$0xf]
        %v274 = vld [vmem:[%s250 + $0x1c] sm:$0xf]
        %v275 = vld [vmem:[%s250 + $0x20] sm:$0xf]
        %v276 = vld [vmem:[%s250 + $0x24] sm:$0xf]
        %v277 = vld [vmem:[%s250 + $0x28] sm:$0xf]
        %v278 = vld [vmem:[%s250 + $0x2c] sm:$0xf]
        %v279 = vld [vmem:[%s250 + $0x30] sm:$0xf]
        %v280 = vld [vmem:[%s250 + $0x34] sm:$0xf]
        %v281 = vld [vmem:[%s250 + $0x38] sm:$0xf]
        %v282 = vld [vmem:[%s250 + $0x3c] sm:$0xf]
        %v283 = vld [vmem:[%s250 + $0x40] sm:$0xf]
        %v284 = vld [vmem:[%s250 + $0x44] sm:$0xf]
        %v285 = vld [vmem:[%s250 + $0x48] sm:$0xf]
        %v286 = vld [vmem:[%s250 + $0x4c] sm:$0xf]
        %v287 = vld [vmem:[%s250 + $0x50] sm:$0xf]
        %v288 = vld [vmem:[%s250 + $0x54] sm:$0xf]
        %v289 = vld [vmem:[%s250 + $0x58] sm:$0xf]
        %v290 = vld [vmem:[%s250 + $0x5c] sm:$0xf]
        %v291 = vld [vmem:[%s250 + $0x60] sm:$0xf]
        %v292 = vld [vmem:[%s250 + $0x64] sm:$0xf]
        %v293 = vld [vmem:[%s250 + $0x68] sm:$0xf]
        %v294 = vld [vmem:[%s250 + $0x6c] sm:$0xf]
        %v295 = vld [vmem:[%s250 + $0x70] sm:$0xf]
        %v296 = vld [vmem:[%s250 + $0x74] sm:$0xf]
        %v297 = vld [vmem:[%s250 + $0x78] sm:$0xf]
        %v298 = vld [vmem:[%s250 + $0x7c] sm:$0xf]
        %v299 = vld [vmem:[%s255] sm:$0xf]
        %v300 = vld [vmem:[%s255 + $0x4] sm:$0xf]
        %v301 = vld [vmem:[%s255 + $0x8] sm:$0xf]
        %v302 = vld [vmem:[%s255 + $0xc] sm:$0xf]
        %v303 = vld [vmem:[%s255 + $0x10] sm:$0xf]
        %v304 = vld [vmem:[%s255 + $0x14] sm:$0xf]
        %v305 = vld [vmem:[%s255 + $0x18] sm:$0xf]
        %v306 = vld [vmem:[%s255 + $0x1c] sm:$0xf]
        %v307 = vld [vmem:[%s258] sm:$0x1]
        %v309 = vperm.slane %v307, 0
        %v343 = vunpack.c.l.b16 %v267
        %v344 = vunpack.c.l.b16 %v268
        %v345 = vunpack.c.l.b16 %v269
        %v346 = vunpack.c.l.b16 %v270
        %v347 = vunpack.c.l.b16 %v271
        %v348 = vunpack.c.l.b16 %v272
        %v349 = vunpack.c.l.b16 %v273
        %v350 = vunpack.c.l.b16 %v274
        %v351 = vunpack.c.l.b16 %v275
        %v352 = vunpack.c.l.b16 %v276
        %v353 = vunpack.c.l.b16 %v277
        %v354 = vunpack.c.l.b16 %v278
        %v355 = vunpack.c.l.b16 %v279
        %v356 = vunpack.c.l.b16 %v280
        %v357 = vunpack.c.l.b16 %v281
        %v358 = vunpack.c.l.b16 %v282
        %v359 = vunpack.c.l.b16 %v283
        %v360 = vunpack.c.l.b16 %v284
        %v361 = vunpack.c.l.b16 %v285
        %v362 = vunpack.c.l.b16 %v286
        %v363 = vunpack.c.l.b16 %v287
        %v364 = vunpack.c.l.b16 %v288
        %v365 = vunpack.c.l.b16 %v289
        %v366 = vunpack.c.l.b16 %v290
        %v367 = vunpack.c.l.b16 %v291
        %v368 = vunpack.c.l.b16 %v292
        %v369 = vunpack.c.l.b16 %v293
        %v370 = vunpack.c.l.b16 %v294
        %v371 = vunpack.c.l.b16 %v295
        %v372 = vunpack.c.l.b16 %v296
        %v373 = vunpack.c.l.b16 %v297
        %v374 = vunpack.c.l.b16 %v298
        %v375 = vpack.c.b16 %v344, %v343
        %v376 = vpack.c.b16 %v346, %v345
        %v377 = vpack.c.b16 %v348, %v347
        %v378 = vpack.c.b16 %v350, %v349
        %v379 = vpack.c.b16 %v352, %v351
        %v380 = vpack.c.b16 %v354, %v353
        %v381 = vpack.c.b16 %v356, %v355
        %v382 = vpack.c.b16 %v358, %v357
        %v383 = vpack.c.b16 %v360, %v359
        %v384 = vpack.c.b16 %v362, %v361
        %v385 = vpack.c.b16 %v364, %v363
        %v386 = vpack.c.b16 %v366, %v365
        %v387 = vpack.c.b16 %v368, %v367
        %v388 = vpack.c.b16 %v370, %v369
        %v389 = vpack.c.b16 %v372, %v371
        %v390 = vpack.c.b16 %v374, %v373
        %v399 = vunpack.c.l.b16 %v299
        %v400 = vunpack.c.l.b16 %v300
        %v401 = vunpack.c.l.b16 %v301
        %v402 = vunpack.c.l.b16 %v302
        %v403 = vunpack.c.l.b16 %v303
        %v404 = vunpack.c.l.b16 %v304
        %v405 = vunpack.c.l.b16 %v305
        %v406 = vunpack.c.l.b16 %v306
        %v407 = vpack.c.b16 %v400, %v399
        %v408 = vpack.c.b16 %v402, %v401
        %v409 = vpack.c.b16 %v404, %v403
        %v410 = vpack.c.b16 %v406, %v405
        %vm415 = vcmask 523264
        %v417 = vsel %vm415, %v375, 0
        %v420 = vsel %vm415, %v376, 0
        %v423 = vsel %vm415, %v377, 0
        %v426 = vsel %vm415, %v378, 0
        %v429 = vsel %vm415, %v379, 0
        %v432 = vsel %vm415, %v380, 0
        %v435 = vsel %vm415, %v381, 0
        %v438 = vsel %vm415, %v382, 0
        %v441 = vsel %vm415, %v383, 0
        %v444 = vsel %vm415, %v384, 0
        %v447 = vsel %vm415, %v385, 0
        %v450 = vsel %vm415, %v386, 0
        %v453 = vsel %vm415, %v387, 0
        %v456 = vsel %vm415, %v388, 0
        %v459 = vsel %vm415, %v389, 0
        %v462 = vsel %vm415, %v390, 0
        %464 = vmatpush.bf16.msra.mxu0 0
        %465 = vmatpush.bf16.msra.mxu0 0
        %466 = vmatpush.bf16.msra.mxu0 0
        %467 = vmatpush.bf16.msra.mxu0 0
        %468 = vmatpush.bf16.msra.mxu0 %v410
        %469 = vmatpush.bf16.msra.mxu0 %v409
        %470 = vmatpush.bf16.msra.mxu0 %v408
        %471 = vmatpush.bf16.msra.mxu0 %v407
        %472 = vmatmul.bf16.gmra.mxu0 %v417
        %v473 = vpop.f32.mrf.mxu0
        %v474 = vadd.f32 %v309, %v473
        %v475 = vpop.f32.mrf.mxu0
        %v476 = vadd.f32 %v309, %v475
        %477 = vmatmul.bf16.gmra.mxu0 %v420
        %v478 = vpop.f32.mrf.mxu0
        %v479 = vadd.f32 %v309, %v478
        %v480 = vpop.f32.mrf.mxu0
        %v481 = vadd.f32 %v309, %v480
        %482 = vmatmul.bf16.gmra.mxu0 %v423
        %v483 = vpop.f32.mrf.mxu0
        %v484 = vadd.f32 %v309, %v483
        %v485 = vpop.f32.mrf.mxu0
        %v486 = vadd.f32 %v309, %v485
        %487 = vmatmul.bf16.gmra.mxu0 %v426
        %v488 = vpop.f32.mrf.mxu0
        %v489 = vadd.f32 %v309, %v488
        %v490 = vpop.f32.mrf.mxu0
        %v491 = vadd.f32 %v309, %v490
        %492 = vmatmul.bf16.gmra.mxu0 %v429
        %v493 = vpop.f32.mrf.mxu0
        %v494 = vadd.f32 %v309, %v493
        %v495 = vpop.f32.mrf.mxu0
        %v496 = vadd.f32 %v309, %v495
        %497 = vmatmul.bf16.gmra.mxu0 %v432
        %v498 = vpop.f32.mrf.mxu0
        %v499 = vadd.f32 %v309, %v498
        %v500 = vpop.f32.mrf.mxu0
        %v501 = vadd.f32 %v309, %v500
        %502 = vmatmul.bf16.gmra.mxu0 %v435
        %v503 = vpop.f32.mrf.mxu0
        %v504 = vadd.f32 %v309, %v503
        %v505 = vpop.f32.mrf.mxu0
        %v506 = vadd.f32 %v309, %v505
        %507 = vmatmul.bf16.gmra.mxu0 %v438
        %v508 = vpop.f32.mrf.mxu0
        %v509 = vadd.f32 %v309, %v508
        %v510 = vpop.f32.mrf.mxu0
        %v511 = vadd.f32 %v309, %v510
        %512 = vmatmul.bf16.gmra.mxu0 %v441
        %v513 = vpop.f32.mrf.mxu0
        %v514 = vadd.f32 %v309, %v513
        %v515 = vpop.f32.mrf.mxu0
        %v516 = vadd.f32 %v309, %v515
        %517 = vmatmul.bf16.gmra.mxu0 %v444
        %v518 = vpop.f32.mrf.mxu0
        %v519 = vadd.f32 %v309, %v518
        %v520 = vpop.f32.mrf.mxu0
        %v521 = vadd.f32 %v309, %v520
        %522 = vmatmul.bf16.gmra.mxu0 %v447
        %v523 = vpop.f32.mrf.mxu0
        %v524 = vadd.f32 %v309, %v523
        %v525 = vpop.f32.mrf.mxu0
        %v526 = vadd.f32 %v309, %v525
        %527 = vmatmul.bf16.gmra.mxu0 %v450
        %v528 = vpop.f32.mrf.mxu0
        %v529 = vadd.f32 %v309, %v528
        %v530 = vpop.f32.mrf.mxu0
        %v531 = vadd.f32 %v309, %v530
        %532 = vmatmul.bf16.gmra.mxu0 %v453
        %v533 = vpop.f32.mrf.mxu0
        %v534 = vadd.f32 %v309, %v533
        %v535 = vpop.f32.mrf.mxu0
        %v536 = vadd.f32 %v309, %v535
        %537 = vmatmul.bf16.gmra.mxu0 %v456
        %v538 = vpop.f32.mrf.mxu0
        %v539 = vadd.f32 %v309, %v538
        %v540 = vpop.f32.mrf.mxu0
        %v541 = vadd.f32 %v309, %v540
        %542 = vmatmul.bf16.gmra.mxu0 %v459
        %v543 = vpop.f32.mrf.mxu0
        %v544 = vadd.f32 %v309, %v543
        %v545 = vpop.f32.mrf.mxu0
        %v546 = vadd.f32 %v309, %v545
        %547 = vmatmul.bf16.gmra.mxu0 %v462
        %v548 = vpop.f32.mrf.mxu0
        %v549 = vadd.f32 %v309, %v548
        %v550 = vpop.f32.mrf.mxu0
        %v551 = vadd.f32 %v309, %v550
        %552 = vdwg.mxu0
        %v553 = vld [vmem:[%s263] sm:$0xff]
        %v554 = vld [vmem:[%s263 + $0x8] sm:$0xff]
        %v555 = vld [vmem:[%s263 + $0x10] sm:$0xff]
        %v556 = vld [vmem:[%s263 + $0x18] sm:$0xff]
        %v557 = vld [vmem:[%s263 + $0x20] sm:$0xff]
        %v558 = vld [vmem:[%s263 + $0x28] sm:$0xff]
        %v559 = vld [vmem:[%s263 + $0x30] sm:$0xff]
        %v560 = vld [vmem:[%s263 + $0x38] sm:$0xff]
        %v561 = vld [vmem:[%s263 + $0x40] sm:$0xff]
        %v562 = vld [vmem:[%s263 + $0x48] sm:$0xff]
        %v563 = vld [vmem:[%s263 + $0x50] sm:$0xff]
        %v564 = vld [vmem:[%s263 + $0x58] sm:$0xff]
        %v565 = vld [vmem:[%s263 + $0x60] sm:$0xff]
        %v566 = vld [vmem:[%s263 + $0x68] sm:$0xff]
        %v567 = vld [vmem:[%s263 + $0x70] sm:$0xff]
        %v568 = vld [vmem:[%s263 + $0x78] sm:$0xff]
        %v569 = vld [vmem:[%s263 + $0x80] sm:$0xff]
        %v570 = vld [vmem:[%s263 + $0x88] sm:$0xff]
        %v571 = vld [vmem:[%s263 + $0x90] sm:$0xff]
        %v572 = vld [vmem:[%s263 + $0x98] sm:$0xff]
        %v573 = vld [vmem:[%s263 + $0xa0] sm:$0xff]
        %v574 = vld [vmem:[%s263 + $0xa8] sm:$0xff]
        %v575 = vld [vmem:[%s263 + $0xb0] sm:$0xff]
        %v576 = vld [vmem:[%s263 + $0xb8] sm:$0xff]
        %v577 = vld [vmem:[%s263 + $0xc0] sm:$0xff]
        %v578 = vld [vmem:[%s263 + $0xc8] sm:$0xff]
        %v579 = vld [vmem:[%s263 + $0xd0] sm:$0xff]
        %v580 = vld [vmem:[%s263 + $0xd8] sm:$0xff]
        %v581 = vld [vmem:[%s263 + $0xe0] sm:$0xff]
        %v582 = vld [vmem:[%s263 + $0xe8] sm:$0xff]
        %v583 = vld [vmem:[%s263 + $0xf0] sm:$0xff]
        %v584 = vld [vmem:[%s263 + $0xf8] sm:$0xff]
        %586 = vset.pattern.permute.xlu0 0
        %587 = vperm.xlu0 %586, %v553
        %v588 = vpop.permute.xlu0 %587
        %591 = vset.pattern.permute.xlu0 0
        %592 = vperm.xlu0 %591, %v554
        %v593 = vpop.permute.xlu0 %592
        %596 = vset.pattern.permute.xlu0 0
        %597 = vperm.xlu0 %596, %v555
        %v598 = vpop.permute.xlu0 %597
        %601 = vset.pattern.permute.xlu0 0
        %602 = vperm.xlu0 %601, %v556
        %v603 = vpop.permute.xlu0 %602
        %606 = vset.pattern.permute.xlu0 0
        %607 = vperm.xlu0 %606, %v557
        %v608 = vpop.permute.xlu0 %607
        %611 = vset.pattern.permute.xlu0 0
        %612 = vperm.xlu0 %611, %v558
        %v613 = vpop.permute.xlu0 %612
        %616 = vset.pattern.permute.xlu0 0
        %617 = vperm.xlu0 %616, %v559
        %v618 = vpop.permute.xlu0 %617
        %621 = vset.pattern.permute.xlu0 0
        %622 = vperm.xlu0 %621, %v560
        %v623 = vpop.permute.xlu0 %622
        %626 = vset.pattern.permute.xlu0 0
        %627 = vperm.xlu0 %626, %v561
        %v628 = vpop.permute.xlu0 %627
        %631 = vset.pattern.permute.xlu0 0
        %632 = vperm.xlu0 %631, %v562
        %v633 = vpop.permute.xlu0 %632
        %636 = vset.pattern.permute.xlu0 0
        %637 = vperm.xlu0 %636, %v563
        %v638 = vpop.permute.xlu0 %637
        %641 = vset.pattern.permute.xlu0 0
        %642 = vperm.xlu0 %641, %v564
        %v643 = vpop.permute.xlu0 %642
        %646 = vset.pattern.permute.xlu0 0
        %647 = vperm.xlu0 %646, %v565
        %v648 = vpop.permute.xlu0 %647
        %651 = vset.pattern.permute.xlu0 0
        %652 = vperm.xlu0 %651, %v566
        %v653 = vpop.permute.xlu0 %652
        %656 = vset.pattern.permute.xlu0 0
        %657 = vperm.xlu0 %656, %v567
        %v658 = vpop.permute.xlu0 %657
        %661 = vset.pattern.permute.xlu0 0
        %662 = vperm.xlu0 %661, %v568
        %v663 = vpop.permute.xlu0 %662
        %666 = vset.pattern.permute.xlu0 0
        %667 = vperm.xlu0 %666, %v569
        %v668 = vpop.permute.xlu0 %667
        %671 = vset.pattern.permute.xlu0 0
        %672 = vperm.xlu0 %671, %v570
        %v673 = vpop.permute.xlu0 %672
        %676 = vset.pattern.permute.xlu0 0
        %677 = vperm.xlu0 %676, %v571
        %v678 = vpop.permute.xlu0 %677
        %681 = vset.pattern.permute.xlu0 0
        %682 = vperm.xlu0 %681, %v572
        %v683 = vpop.permute.xlu0 %682
        %686 = vset.pattern.permute.xlu0 0
        %687 = vperm.xlu0 %686, %v573
        %v688 = vpop.permute.xlu0 %687
        %691 = vset.pattern.permute.xlu0 0
        %692 = vperm.xlu0 %691, %v574
        %v693 = vpop.permute.xlu0 %692
        %696 = vset.pattern.permute.xlu0 0
        %697 = vperm.xlu0 %696, %v575
        %v698 = vpop.permute.xlu0 %697
        %701 = vset.pattern.permute.xlu0 0
        %702 = vperm.xlu0 %701, %v576
        %v703 = vpop.permute.xlu0 %702
        %706 = vset.pattern.permute.xlu0 0
        %707 = vperm.xlu0 %706, %v577
        %v708 = vpop.permute.xlu0 %707
        %711 = vset.pattern.permute.xlu0 0
        %712 = vperm.xlu0 %711, %v578
        %v713 = vpop.permute.xlu0 %712
        %716 = vset.pattern.permute.xlu0 0
        %717 = vperm.xlu0 %716, %v579
        %v718 = vpop.permute.xlu0 %717
        %721 = vset.pattern.permute.xlu0 0
        %722 = vperm.xlu0 %721, %v580
        %v723 = vpop.permute.xlu0 %722
        %726 = vset.pattern.permute.xlu0 0
        %727 = vperm.xlu0 %726, %v581
        %v728 = vpop.permute.xlu0 %727
        %731 = vset.pattern.permute.xlu0 0
        %732 = vperm.xlu0 %731, %v582
        %v733 = vpop.permute.xlu0 %732
        %736 = vset.pattern.permute.xlu0 0
        %737 = vperm.xlu0 %736, %v583
        %v738 = vpop.permute.xlu0 %737
        %741 = vset.pattern.permute.xlu0 0
        %742 = vperm.xlu0 %741, %v584
        %v743 = vpop.permute.xlu0 %742
        %v745 = vmul.f32 %v474, %v588
        %v746 = vmul.f32 %v476, %v593
        %v747 = vmul.f32 %v479, %v598
        %v748 = vmul.f32 %v481, %v603
        %v749 = vmul.f32 %v484, %v608
        %v750 = vmul.f32 %v486, %v613
        %v751 = vmul.f32 %v489, %v618
        %v752 = vmul.f32 %v491, %v623
        %v753 = vmul.f32 %v494, %v628
        %v754 = vmul.f32 %v496, %v633
        %v755 = vmul.f32 %v499, %v638
        %v756 = vmul.f32 %v501, %v643
        %v757 = vmul.f32 %v504, %v648
        %v758 = vmul.f32 %v506, %v653
        %v759 = vmul.f32 %v509, %v658
        %v760 = vmul.f32 %v511, %v663
        %v761 = vmul.f32 %v514, %v668
        %v762 = vmul.f32 %v516, %v673
        %v763 = vmul.f32 %v519, %v678
        %v764 = vmul.f32 %v521, %v683
        %v765 = vmul.f32 %v524, %v688
        %v766 = vmul.f32 %v526, %v693
        %v767 = vmul.f32 %v529, %v698
        %v768 = vmul.f32 %v531, %v703
        %v769 = vmul.f32 %v534, %v708
        %v770 = vmul.f32 %v536, %v713
        %v771 = vmul.f32 %v539, %v718
        %v772 = vmul.f32 %v541, %v723
        %v773 = vmul.f32 %v544, %v728
        %v774 = vmul.f32 %v546, %v733
        %v775 = vmul.f32 %v549, %v738
        %v776 = vmul.f32 %v551, %v743
        %777 = vst [vmem:[%s245] sm:$0xff] %v745
        %778 = vst [vmem:[%s245 + $0x8] sm:$0xff] %v746
        %779 = vst [vmem:[%s245 + $0x10] sm:$0xff] %v747
        %780 = vst [vmem:[%s245 + $0x18] sm:$0xff] %v748
        %781 = vst [vmem:[%s245 + $0x20] sm:$0xff] %v749
        %782 = vst [vmem:[%s245 + $0x28] sm:$0xff] %v750
        %783 = vst [vmem:[%s245 + $0x30] sm:$0xff] %v751
        %784 = vst [vmem:[%s245 + $0x38] sm:$0xff] %v752
        %785 = vst [vmem:[%s245 + $0x40] sm:$0xff] %v753
        %786 = vst [vmem:[%s245 + $0x48] sm:$0xff] %v754
        %787 = vst [vmem:[%s245 + $0x50] sm:$0xff] %v755
        %788 = vst [vmem:[%s245 + $0x58] sm:$0xff] %v756
        %789 = vst [vmem:[%s245 + $0x60] sm:$0xff] %v757
        %790 = vst [vmem:[%s245 + $0x68] sm:$0xff] %v758
        %791 = vst [vmem:[%s245 + $0x70] sm:$0xff] %v759
        %792 = vst [vmem:[%s245 + $0x78] sm:$0xff] %v760
        %793 = vst [vmem:[%s245 + $0x80] sm:$0xff] %v761
        %794 = vst [vmem:[%s245 + $0x88] sm:$0xff] %v762
        %795 = vst [vmem:[%s245 + $0x90] sm:$0xff] %v763
        %796 = vst [vmem:[%s245 + $0x98] sm:$0xff] %v764
        %797 = vst [vmem:[%s245 + $0xa0] sm:$0xff] %v765
        %798 = vst [vmem:[%s245 + $0xa8] sm:$0xff] %v766
        %799 = vst [vmem:[%s245 + $0xb0] sm:$0xff] %v767
        %800 = vst [vmem:[%s245 + $0xb8] sm:$0xff] %v768
        %801 = vst [vmem:[%s245 + $0xc0] sm:$0xff] %v769
        %802 = vst [vmem:[%s245 + $0xc8] sm:$0xff] %v770
        %803 = vst [vmem:[%s245 + $0xd0] sm:$0xff] %v771
        %804 = vst [vmem:[%s245 + $0xd8] sm:$0xff] %v772
        %805 = vst [vmem:[%s245 + $0xe0] sm:$0xff] %v773
        %806 = vst [vmem:[%s245 + $0xe8] sm:$0xff] %v774
        %807 = vst [vmem:[%s245 + $0xf0] sm:$0xff] %v775
        %808 = vst [vmem:[%s245 + $0xf8] sm:$0xff] %v776
        %s809 = sand.u32 %s144, 1
        %s810 = scalar_lea.sflag [#allocation3], %s809
        %s811 = sand.u32 %s144, 1
        %s812 = smul.addr %s811, 256
        %s813 = scalar_lea.vmem [#allocation2], %s812
        // Predicated region
        $region37: #{tpu_custom_call.1} parent=35 // pred_check
          %p814 = pneg %p154
        $region38: #{tpu_custom_call.1} parent=35 // pred_check_branch
          %816 = sbr.rel (%p814) target = $region40
        $region39: #{tpu_custom_call.1} parent=35 // pred_region
          %s817 = smul.u32 32, %s22
          %819 = vsyncadd %s810, 0
          %s820 = sadd.s32 %s23, %s817
          %s821 = smul.addr %s820, 8
          %s822 = scalar_lea.hbm %s4, %s821
          %s823 = sshll.u32 %s813, 4
          %s824 = int_to_ptr.vmem [resolvable:$true] %s823
          %s825 = sshll.u32 %s822, 4
          %s826 = int_to_ptr.hbm [resolvable:$true] %s825
          %831 = dma.vmem_to_hbm [thread:$0]  %s824, 4096, %s826, %s810, 128, 128, 8
        $region40: #{tpu_custom_call.1} parent=35 // pred_fallthru
          _
      $region36: #{tpu_custom_call.1} parent=5 // pred_fallthru
        _
      %p832 = scmp.le.s32.totalorder 2, %s13
      // Predicated region
      $region41: #{tpu_custom_call.1} parent=5 // pred_check
        %p833 = pneg %p832
      $region42: #{tpu_custom_call.1} parent=5 // pred_check_branch
        %835 = sbr.rel (%p833) target = $region44
      $region43: #{tpu_custom_call.1} parent=5 // pred_region
        %s836 = ssub.s32 %s13, 2
        // Predicated region
        $region45: #{tpu_custom_call.1} parent=43 // pred_check
          %p837 = pneg %p160
        $region46: #{tpu_custom_call.1} parent=43 // pred_check_branch
          %839 = sbr.rel (%p837) target = $region48
        $region47: #{tpu_custom_call.1} parent=43 // pred_region
          %s840 = sand.u32 %s145, 1
          %s841 = scalar_lea.sflag [#allocation3], %s840
          %s842 = sand.u32 %s145, 1
          %s843 = smul.addr %s842, 256
          %s844 = scalar_lea.vmem [#allocation2], %s843
          %846 = dma.done %s841, 4096
        $region48: #{tpu_custom_call.1} parent=43 // pred_fallthru
          _
      $region44: #{tpu_custom_call.1} parent=5 // pred_fallthru
        _
    $region6: #{tpu_custom_call.1} parent=1 // loop_footer
      %s17 = sadd.s32 1, %s13
    $region7: #{tpu_custom_call.1} parent=1 // loop_footer_branch
      %12 = sbr.rel target = $region3
    $region8: #{tpu_custom_call.1} parent=1 // loop_exit
      _
    %847 = vsyncpa [#allocation3], 1
    %s848 = scalar_lea.sflag [#allocation3], 1
    %849 = vsyncpa %s848, 1

</llo_original>
